<compile_context>
chip_gen: v5e
topology: v5e:2x2
jax: 0.10.0
libtpu: 0.0.40
codegen_flags: <defaults>
</compile_context>

<pallas_src>
import jax
import jax.numpy as jnp
from jax import lax
from jax.experimental import pallas as pl
from jax.experimental.pallas import tpu as pltpu

EPS = 1e-5


# --------------------------------------------------------------------------- #
# Per-generation VMEM budgets.                                                 #
# --------------------------------------------------------------------------- #
def _vmem_limits():
    """(vmem_limit_bytes, per-tile working-set budget) sized per TPU generation."""
    phys = None
    try:
        info = pltpu.get_tpu_info()
        phys = getattr(info, "vmem_capacity_bytes", None) or getattr(info, "vmem_bytes", None)
    except Exception:
        phys = None
    if not phys:
        phys = 64 << 20                      # conservative default (v7x per-TC)
    vmem_limit = min(int(phys) * 3 // 4, 96 << 20)   # v7x -> 48 MiB, v5e/v6e -> 96 MiB
    tile_budget = max(4 << 20, vmem_limit // 4)      # v7x -> 12 MiB, v5e/v6e -> 24 MiB
    return vmem_limit, tile_budget


def _padded_cout(cout, force=None):
    """Pad Cout to a lane-dense multiple of 128 when the extra writes are <=2x."""
    pad_to = -(-cout // 128) * 128
    if pad_to == cout:
        return cout
    if force is None:
        force = pad_to <= 2 * cout
    return pad_to if force else cout


def _pick_row_tile(H, W, Cin, Cout_p, conv_impl, tile_budget):
    """Largest row tile whose (rough) f32 working set fits the VMEM budget."""
    if conv_impl == "fused":
        # 2x input buf + act + 3 shifted copies + 9*Cin patch (+ concat transient) + 3x out
        per_row = 4 * W * (2 * Cin + 3 * Cin + 3 * Cin + 18 * Cin + 3 * Cout_p)
    else:
        # 2x input buf + act + 3 shifted copies + f32 accumulator + 2x out
        per_row = 4 * W * (2 * Cin + 3 * Cin + 3 * Cin + 3 * Cout_p)
    th = max(1, min(H, tile_budget // max(per_row, 1)))
    n = pl.cdiv(H, th)
    return pl.cdiv(H, n)                     # balance tiles (last tile may be ragged)


# --------------------------------------------------------------------------- #
# Pass 1: per-image BN statistics (sum and sum-of-squares per channel).        #
# --------------------------------------------------------------------------- #
def _make_bn_stats_kernel(H, TH):
    def kernel(x_ref, sums_ref):
        i = pl.program_id(1)

        @pl.when(i == 0)
        def _():
            sums_ref[...] = jnp.zeros_like(sums_ref)

        th, w, cin = x_ref.shape
        # Ragged last row-tile: rows past H are stale VMEM -> mask before summing.
        r = lax.broadcasted_iota(jnp.int32, (th, 1, 1), 0)
        x = jnp.where(i * TH + r < H, x_ref[...].astype(jnp.float32), 0.0)
        x = x.reshape(th * w, cin)
        s = jnp.sum(x, axis=0, keepdims=True)                  # (1, Cin)
        s2 = jnp.sum(x * x, axis=0, keepdims=True)             # (1, Cin)
        sums_ref[...] += jnp.concatenate([s, s2], axis=0)      # (2, Cin) per-image acc
    return kernel


# --------------------------------------------------------------------------- #
# Pass 2: fused BN(scale/shift) + ReLU + 3x3 conv over H-row tiles.            #
# --------------------------------------------------------------------------- #
def _make_bn_relu_conv_kernel(H, TH, W, Cin, Cout_p, mm_dtype, conv_impl):
    R = TH + 2                                   # tile rows + top/bottom halo

    def kernel(top_ref, cur_ref, bot_ref, scale_ref, shift_ref, w_ref, b_ref, o_ref):
        i = pl.program_id(1)
        scale = scale_ref[0, :]
        shift = shift_ref[0, :]

        def bn_relu(v):
            return jnp.maximum(v.astype(jnp.float32) * scale + shift, 0.0)

        # Row-validity masks: image boundary (== conv zero padding) and ragged
        # last tile (stale rows past H). Halos come from two 1-row BlockSpec
        # fetches with clamped index maps; the clamp is masked out here.
        r = lax.broadcasted_iota(jnp.int32, (TH, 1, 1), 0)
        cur = jnp.where(i * TH + r < H, bn_relu(cur_ref[...]), 0.0)              # (TH,W,Cin)
        top = jnp.where(i > 0, bn_relu(top_ref[...]), 0.0)                       # (1,W,Cin)
        bot = jnp.where(i < pl.num_programs(1) - 1, bn_relu(bot_ref[...]), 0.0)  # (1,W,Cin)
        act = jnp.concatenate([top, cur, bot], axis=0).reshape(R * W, Cin)       # f32

        # Column index of every flattened row (for boundary-column masking).
        col = lax.broadcasted_iota(jnp.int32, (R, W, 1), 1).reshape(R * W, 1)

        def shift_cols(x2d, dw):
            """out[r*W + w] = x2d[r*W + (w+dw)], zero at the image's W boundary."""
            if dw == 0:
                return x2d
            rolled = pltpu.roll(x2d, shift=(-dw) % (R * W), axis=0)   # XLU, ~free
            edge = (W - 1) if dw > 0 else 0
            return jnp.where(col == edge, 0.0, rolled)

        # Cast to matmul dtype only after all elementwise math (BN/ReLU stay f32).
        shifted = [shift_cols(act, dw).astype(mm_dtype) for dw in (-1, 0, 1)]

        if conv_impl == "fused":
            # Tiny-Cin path: single (TH*W, 9*Cin) @ (9*Cin, Cout) MXU matmul so the
            # contraction dim is not << 128. Tap order (kw, kh, cin) matches the
            # packed weight layout built in the wrapper.
            taps = [shifted[kw][kh * W:kh * W + TH * W, :]
                    for kw in range(3) for kh in range(3)]
            patch = jnp.concatenate(taps, axis=-1)                    # (TH*W, 9*Cin)
            out = jnp.dot(patch, w_ref[...], preferred_element_type=jnp.float32)
        else:
            # Production-Cin path: accumulate 9 K=Cin matmuls; no materialized
            # im2col patch (v7x MRB / f32 acc handles the accumulation).
            out = jnp.zeros((TH * W, Cout_p), jnp.float32)
            for kw in range(3):
                for kh in range(3):
                    tap = shifted[kw][kh * W:kh * W + TH * W, :]      # (TH*W, Cin)
                    out = out + jnp.dot(tap, w_ref[kw * 3 + kh],
                                        preferred_element_type=jnp.float32)

        out = out + b_ref[0, :]
        o_ref[...] = out.reshape(TH, W, Cout_p).astype(o_ref.dtype)

    return kernel


# --------------------------------------------------------------------------- #
# Wrappers                                                                     #
# --------------------------------------------------------------------------- #
def dense_layer_forward_nhwc(x_nhwc, gamma, beta, w_oihw, b, *,
                             matmul_dtype=jnp.bfloat16,
                             conv_impl=None, row_tile=None, pad_cout=None):
    N, H, W, Cin = x_nhwc.shape
    Cout = w_oihw.shape[0]
    assert w_oihw.shape == (Cout, Cin, 3, 3)

    if conv_impl is None:
        conv_impl = "taps" if Cin >= 64 else "fused"
    assert conv_impl in ("fused", "taps")

    Cout_p = _padded_cout(Cout, pad_cout)
    vmem_limit, tile_budget = _vmem_limits()
    TH = int(row_tile) if row_tile is not None else _pick_row_tile(
        H, W, Cin, Cout_p, conv_impl, tile_budget)
    grid = (N, pl.cdiv(H, TH))

    # ---- pass 1: batch statistics (per-image partials, reduced in XLA) ----
    partial = pl.pallas_call(
        _make_bn_stats_kernel(H, TH),
        out_shape=jax.ShapeDtypeStruct((N, 2, Cin), jnp.float32),
        grid=grid,
        in_specs=[pl.BlockSpec((None, TH, W, Cin), lambda n, i: (n, i, 0, 0))],
        out_specs=pl.BlockSpec((None, 2, Cin), lambda n, i: (n, 0, 0)),
        compiler_params=pltpu.CompilerParams(
            dimension_semantics=("parallel", "arbitrary"),
            vmem_limit_bytes=vmem_limit),
    )(x_nhwc)
    sums = jnp.sum(partial, axis=0)                               # (2, Cin)

    cnt = float(N * H * W)
    mean = sums[0] / cnt
    # Single-pass E[x^2]-E[x]^2 (biased), clamped at 0. For production stats with
    # huge N*H*W and large means, switch to a two-pass / shifted accumulation.
    var = jnp.maximum(sums[1] / cnt - mean * mean, 0.0)
    scale = (gamma.astype(jnp.float32) * lax.rsqrt(var + EPS)).reshape(1, Cin)
    shift = (beta.astype(jnp.float32) - mean * scale[0]).reshape(1, Cin)

    # Pack 3x3 weights (tap order kw-major, kh, cin) in the matmul dtype; pad
    # Cout to a lane-dense width when worthwhile. Bias stays f32.
    w_kwkh = jnp.transpose(w_oihw, (3, 2, 1, 0)).astype(matmul_dtype)  # (3,3,Cin,Cout)
    b_p = b.astype(jnp.float32)
    if Cout_p != Cout:
        w_kwkh = jnp.pad(w_kwkh, ((0, 0), (0, 0), (0, 0), (0, Cout_p - Cout)))
        b_p = jnp.pad(b_p, (0, Cout_p - Cout))
    if conv_impl == "fused":
        w_arg = w_kwkh.reshape(9 * Cin, Cout_p)
        w_spec = pl.BlockSpec((9 * Cin, Cout_p), lambda n, i: (0, 0))
    else:
        w_arg = w_kwkh.reshape(9, Cin, Cout_p)
        w_spec = pl.BlockSpec((9, Cin, Cout_p), lambda n, i: (0, 0, 0))
    b2d = b_p.reshape(1, Cout_p)

    row_spec = lambda n, i: (n, i, 0, 0)
    top_spec = lambda n, i: (n, jnp.maximum(i * TH - 1, 0), 0, 0)
    bot_spec = lambda n, i: (n, jnp.minimum(i * TH + TH, H - 1), 0, 0)
    const2d = lambda n, i: (0, 0)

    # TODO(synk): fuse the three per-step fetches (halo/tile/halo) into one
    # (TH+2)-row element-offset window; with budget-sized TH the two 1-row DMAs
    # are a small fraction of per-step traffic, so kept simple here.
    out = pl.pallas_call(
        _make_bn_relu_conv_kernel(H, TH, W, Cin, Cout_p, matmul_dtype, conv_impl),
        out_shape=jax.ShapeDtypeStruct((N, H, W, Cout_p), x_nhwc.dtype),
        grid=grid,
        in_specs=[
            pl.BlockSpec((None, 1, W, Cin), top_spec),    # halo row above the tile
            pl.BlockSpec((None, TH, W, Cin), row_spec),   # the row tile itself
            pl.BlockSpec((None, 1, W, Cin), bot_spec),    # halo row below the tile
            pl.BlockSpec((1, Cin), const2d),              # BN scale
            pl.BlockSpec((1, Cin), const2d),              # BN shift
            w_spec,                                       # packed conv weights
            pl.BlockSpec((1, Cout_p), const2d),           # conv bias
        ],
        out_specs=pl.BlockSpec((None, TH, W, Cout_p), row_spec),
        compiler_params=pltpu.CompilerParams(
            dimension_semantics=("parallel", "parallel"),
            vmem_limit_bytes=vmem_limit),
    )(x_nhwc, x_nhwc, x_nhwc, scale, shift, w_arg, b2d)

    if Cout_p != Cout:
        out = out[..., :Cout]
    return out


def dense_layer_forward(x_nchw, gamma, beta, w_oihw, b, **kwargs):
    """BatchNorm2d + ReLU + Conv2d(3,1,1); NCHW in/out like PyTorch.

    The NCHW<->NHWC transposes are extra HBM passes done by XLA; callers that can
    keep activations channels-last should call dense_layer_forward_nhwc directly.
    # TODO(synk): write NCHW output blocks directly from the kernel when W >= 128
    # (lane-dense store); below that the transpose-in-XLA is the better trade.
    """
    x_nhwc = jnp.transpose(x_nchw, (0, 2, 3, 1))
    out_nhwc = dense_layer_forward_nhwc(x_nhwc, gamma, beta, w_oihw, b, **kwargs)
    return jnp.transpose(out_nhwc, (0, 3, 1, 2))


if __name__ == "__main__":
    key = jax.random.PRNGKey(0)
    k1, k2, k3 = jax.random.split(key, 3)

    N, Cin, Cout, H, W = 2, 4, 8, 16, 16

    x = jax.random.normal(k1, (N, Cin, H, W), jnp.float32)

    # Deterministic params (shapes per nn.BatchNorm2d / nn.Conv2d defaults).
    gamma = jnp.ones((Cin,), jnp.float32)
    beta = jnp.zeros((Cin,), jnp.float32)
    fan_in = Cin * 3 * 3
    bound = 1.0 / (fan_in ** 0.5)
    w = jax.random.uniform(k2, (Cout, Cin, 3, 3), jnp.float32, -bound, bound)
    b = jax.random.uniform(k3, (Cout,), jnp.float32, -bound, bound)

    # Pure-JAX reference (training-mode BN -> ReLU -> 3x3 conv, pad=1).
    mean = jnp.mean(x, axis=(0, 2, 3), keepdims=True)
    var = jnp.var(x, axis=(0, 2, 3), keepdims=True)            # biased variance
    a_ref = jnp.maximum((x - mean) / jnp.sqrt(var + EPS) * gamma[None, :, None, None]
                        + beta[None, :, None, None], 0.0)
    ref = lax.conv_general_dilated(a_ref, w, (1, 1), ((1, 1), (1, 1)),
                                   dimension_numbers=("NCHW", "OIHW", "NCHW"))
    ref = ref + b[None, :, None, None]

    def check(out, tol, tag):
        assert out.shape == ref.shape, (tag, out.shape)
        err = float(jnp.max(jnp.abs(out - ref)))
        assert jnp.allclose(out, ref, atol=tol, rtol=tol), (tag, err)

    # 1) f32 MXU operands, fused-im2col path (auto for tiny Cin), budget-sized tile.
    out = jax.block_until_ready(
        dense_layer_forward(x, gamma, beta, w, b, matmul_dtype=jnp.float32))
    check(out, 2e-3, "f32/fused")

    # 2) bf16 MXU operands (default) + ragged row tiles (TH=6 over H=16).
    out = jax.block_until_ready(
        dense_layer_forward(x, gamma, beta, w, b, row_tile=6))
    check(out, 2e-2, "bf16/fused/ragged")

    # 3) tap-accumulation matmul path + lane-padded Cout (-> 128), bf16 operands.
    out = jax.block_until_ready(
        dense_layer_forward(x, gamma, beta, w, b, conv_impl="taps", pad_cout=True))
    check(out, 2e-2, "bf16/taps/padded-cout")

    print("KERNEL_OK")
</pallas_src>

<mosaic_0001>
module attributes {stable_mosaic.version = 11 : i64} {
  func.func @kernel(%arg0: i32, %arg1: i32, %arg2: memref<1x16x16x4xf32, #tpu.memory_space<vmem>>, %arg3: memref<1x2x4xf32, #tpu.memory_space<vmem>>) attributes {dimension_semantics = [#tpu.dimension_semantics<parallel>, #tpu.dimension_semantics<arbitrary>], iteration_bounds = array<i64: 2, 1>, scalar_prefetch = 0 : i64, scratch_operands = 0 : i64, tpu.core_type = #tpu.core_type<tc>, window_params = [{transform_indices = @transform_0, window_bounds = array<i64: 1, 16, 16, 4>}, {transform_indices = @transform_1, window_bounds = array<i64: 1, 2, 4>}]} {
    %c0_i32 = arith.constant 0 : i32
    %0 = arith.cmpi eq, %arg1, %c0_i32 : i32
    %1 = arith.extui %0 : i1 to i32
    %c0_i32_0 = arith.constant 0 : i32
    %2 = arith.cmpi ne, %1, %c0_i32_0 : i32
    scf.if %2 {
      %cst_13 = arith.constant 0.000000e+00 : f32
      %28 = vector.broadcast %cst_13 : f32 to vector<2x4xf32>
      %c0_14 = arith.constant 0 : index
      %c0_15 = arith.constant 0 : index
      %c0_16 = arith.constant 0 : index
      %29 = vector.load %arg3[%c0_14, %c0_15, %c0_16] : memref<1x2x4xf32, #tpu.memory_space<vmem>>, vector<1x2x4xf32>
      %30 = vector.shape_cast %29 : vector<1x2x4xf32> to vector<2x4xf32>
      %31 = vector.shape_cast %28 : vector<2x4xf32> to vector<1x2x4xf32>
      tpu.vector_store %arg3[%c0_14, %c0_15, %c0_16], %31 {strides = array<i32>} : memref<1x2x4xf32, #tpu.memory_space<vmem>>, vector<1x2x4xf32>,
    } else {
    }
    %3 = tpu.iota {dimensions = array<i32: 0>} : vector<16x1x1xi32>
    %c16_i32 = arith.constant 16 : i32
    %4 = arith.muli %arg1, %c16_i32 : i32
    %5 = vector.broadcast %4 : i32 to vector<16x1x1xi32>
    %6 = arith.addi %5, %3 : vector<16x1x1xi32>
    %c16_i32_1 = arith.constant 16 : i32
    %7 = vector.broadcast %c16_i32_1 : i32 to vector<16x1x1xi32>
    %8 = arith.cmpi slt, %6, %7 : vector<16x1x1xi32>
    %c0 = arith.constant 0 : index
    %c0_2 = arith.constant 0 : index
    %c0_3 = arith.constant 0 : index
    %c0_4 = arith.constant 0 : index
    %9 = vector.load %arg2[%c0, %c0_2, %c0_3, %c0_4] : memref<1x16x16x4xf32, #tpu.memory_space<vmem>>, vector<1x16x16x4xf32>
    %10 = vector.shape_cast %9 : vector<1x16x16x4xf32> to vector<16x16x4xf32>
    %cst = arith.constant 0.000000e+00 : f32
    %11 = vector.shape_cast %8 : vector<16x1x1xi1> to vector<16x1x1xi1>
    %12 = vector.broadcast %11 : vector<16x1x1xi1> to vector<16x16x4xi1>
    %13 = vector.broadcast %cst : f32 to vector<16x16x4xf32>
    %14 = arith.select %12, %10, %13 : vector<16x16x4xi1>, vector<16x16x4xf32>
    %15 = vector.shape_cast %14 : vector<16x16x4xf32> to vector<256x4xf32>
    %cst_5 = arith.constant dense<0.000000e+00> : vector<4xf32>
    %16 = vector.multi_reduction <add>, %15, %cst_5 [0] : vector<256x4xf32> to vector<4xf32>
    %17 = vector.shape_cast %16 : vector<4xf32> to vector<1x4xf32>
    %18 = arith.mulf %15, %15 : vector<256x4xf32>
    %cst_6 = arith.constant dense<0.000000e+00> : vector<4xf32>
    %19 = vector.multi_reduction <add>, %18, %cst_6 [0] : vector<256x4xf32> to vector<4xf32>
    %20 = vector.shape_cast %19 : vector<4xf32> to vector<1x4xf32>
    %c0_7 = arith.constant 0 : index
    %c0_8 = arith.constant 0 : index
    %c0_9 = arith.constant 0 : index
    %21 = vector.load %arg3[%c0_7, %c0_8, %c0_9] : memref<1x2x4xf32, #tpu.memory_space<vmem>>, vector<1x2x4xf32>
    %22 = vector.shape_cast %21 : vector<1x2x4xf32> to vector<2x4xf32>
    %23 = tpu.concatenate %17, %20 in 0 : vector<1x4xf32>, vector<1x4xf32> -> vector<2x4xf32>
    %24 = arith.addf %22, %23 : vector<2x4xf32>
    %c0_10 = arith.constant 0 : index
    %c0_11 = arith.constant 0 : index
    %c0_12 = arith.constant 0 : index
    %25 = vector.load %arg3[%c0_10, %c0_11, %c0_12] : memref<1x2x4xf32, #tpu.memory_space<vmem>>, vector<1x2x4xf32>
    %26 = vector.shape_cast %25 : vector<1x2x4xf32> to vector<2x4xf32>
    %27 = vector.shape_cast %24 : vector<2x4xf32> to vector<1x2x4xf32>
    tpu.vector_store %arg3[%c0_10, %c0_11, %c0_12], %27 {strides = array<i32>} : memref<1x2x4xf32, #tpu.memory_space<vmem>>, vector<1x2x4xf32>,
    return
  }
  func.func @transform_0(%arg0: i32, %arg1: i32) -> (i32, i32, i32, i32) {
    %c0_i32 = arith.constant 0 : i32
    %c0_i32_0 = arith.constant 0 : i32
    %c0_i32_1 = arith.constant 0 : i32
    return %arg0, %arg1, %c0_i32, %c0_i32_0 : i32, i32, i32, i32
  }
  func.func @transform_1(%arg0: i32, %arg1: i32) -> (i32, i32, i32) {
    %c0_i32 = arith.constant 0 : i32
    %c0_i32_0 = arith.constant 0 : i32
    %c0_i32_1 = arith.constant 0 : i32
    return %arg0, %c0_i32, %c0_i32_0 : i32, i32, i32
  }
}

</mosaic_0001>

<llo_original>
// kernel: tpu_custom_call.1
$region0: #{tpu_custom_call.1}
  #allocation0 [shape = 'u32[]', space=smem, size = 0x4, offset = 0x4, fixed_abs, tag = 'smem constant byte address 0x4 - core index']
  #allocation1 [shape = 'u32[72,128]{1,0:T(1,128)}', space=vmem, size = 0x9000, scoped, tag = 'internal scratch']
  %s0 = inlined_call_operand.vmem [shape: f32[2,16,16,4], index: 0, kind: input, shape index: {}]
  %s1 = inlined_call_operand.hbm [shape: f32[2,2,4], index: 1, kind: output, shape index: {}]
  %s2 = sld [smem:[#allocation0]]
  $region41: #{tpu_custom_call.1} parent=0
    _
  %s4 = ssub.s32 1, %s2
  %s5 = scalar_select 0, %s4, %s2
  $region1: #{tpu_custom_call.1} parent=0
    #allocation2 [shape = 'u8[2048]{0}', space=vmem, size = 0x800, scoped, tag = 'output window, operand 0']
    #allocation3 [shape = 's32[2]{0}', space=sflag, size = 0x8, scoped, tag = 'scoped memory for tpu_custom_call.1']
    %6 = vsyncpa [#allocation3], 0
    %s7 = scalar_lea.sflag [#allocation3], 1
    %8 = vsyncpa %s7, 0
    loop: start=0, step=1, limit=4
    $region2: #{tpu_custom_call.1} parent=1 // loop_pre_header
      _
    $region3: #{tpu_custom_call.1} parent=1 // loop_header
      %s10 = sphi 0, %s14
      %p11 = scmp.ge.s32.totalorder %s10, 4
      %s17 = sphi 0, %s29
      %s18 = sphi 0, %s25
      %s19 = sphi 0, %s17
      %s20 = sphi 0, %s18
      %s21 = sphi 0, %s19
      %s22 = sphi 0, %s20
      %s34 = sphi 0, %s36
      %s37 = sphi 0, %s34
      %s38 = sphi 0, %s37
      %s54 = sphi 0, %s38
      %s60 = sphi 0, %s62
      %s63 = sphi 0, %s60
      %s64 = sphi 0, %s63
      %s80 = sphi 0, %s64
    $region4: #{tpu_custom_call.1} parent=1 // loop_header_branch
      %13 = sbr.rel (%p11) target = $region8
    $region5: #{tpu_custom_call.1} parent=1 // loop_body
      %s15 = ssub.s32 %s10, 1
      %s16 = ssub.s32 %s10, 2
      %s23 = sadd.s32 1, %s18
      %p24 = scmp.ge.s32.totalorder %s23, 1
      %s25 = scalar_select %p24, 0, %s23
      %s26 = sadd.s32 1, %s17
      %s27 = scalar_select %p24, %s26, %s17
      %p28 = scmp.ge.s32.totalorder %s27, 2
      %s29 = scalar_select %p28, 0, %s27
      %s30 = ssub.s32 %s17, %s29
      %s31 = ssub.s32 %s18, %s25
      %s32 = sor.u32 %s30, %s31
      %p33 = scmp.eq.s32.totalorder %s32, 0
      %s35 = sadd.s32 %s34, 1
      %s36 = scalar_select %p33, %s34, %s35
      %p39 = pneg %p33
      %p40 = scmp.eq.s32.totalorder %s10, 1
      %p41 = por %p39, %p40
      %p42 = scmp.ne.s32.totalorder %s34, %s37
      %p43 = scmp.eq.s32.totalorder %s10, 0
      %p44 = por %p42, %p43
      %p45 = scmp.ne.s32.totalorder %s34, %s37
      %p46 = scmp.eq.s32.totalorder %s15, 1
      %p47 = por %p45, %p46
      %p48 = scmp.ne.s32.totalorder %s37, %s38
      %p49 = scmp.eq.s32.totalorder %s15, 0
      %p50 = por %p48, %p49
      %p51 = scmp.ne.s32.totalorder %s37, %s38
      %p52 = scmp.eq.s32.totalorder %s16, 1
      %p53 = por %p51, %p52
      %p55 = scmp.ne.s32.totalorder %s38, %s54
      %p56 = scmp.eq.s32.totalorder %s16, 0
      %p57 = por %p55, %p56
      %s58 = ssub.s32 %s17, %s29
      %p59 = scmp.eq.s32.totalorder %s58, 0
      %s61 = sadd.s32 %s60, 1
      %s62 = scalar_select %p59, %s60, %s61
      %p65 = pneg %p59
      %p66 = scmp.eq.s32.totalorder %s10, 1
      %p67 = por %p65, %p66
      %p68 = scmp.ne.s32.totalorder %s60, %s63
      %p69 = scmp.eq.s32.totalorder %s10, 0
      %p70 = por %p68, %p69
      %p71 = scmp.ne.s32.totalorder %s60, %s63
      %p72 = scmp.eq.s32.totalorder %s15, 1
      %p73 = por %p71, %p72
      %p74 = scmp.ne.s32.totalorder %s63, %s64
      %p75 = scmp.eq.s32.totalorder %s15, 0
      %p76 = por %p74, %p75
      %p77 = scmp.ne.s32.totalorder %s63, %s64
      %p78 = scmp.eq.s32.totalorder %s16, 1
      %p79 = por %p77, %p78
      %p81 = scmp.ne.s32.totalorder %s64, %s80
      %p82 = scmp.eq.s32.totalorder %s16, 0
      %p83 = por %p81, %p82
      %p84 = scmp.le.s32.totalorder 1, %s10
      %p85 = scmp.lt.s32.totalorder %s10, 3
      %p86 = pnand %p84, %p85
      %p87 = pneg %p86
      // Predicated region
      $region9: #{tpu_custom_call.1} parent=5 // pred_check
        _
      $region10: #{tpu_custom_call.1} parent=5 // pred_check_branch
        %89 = sbr.rel (%p86) target = $region12
      $region11: #{tpu_custom_call.1} parent=5 // pred_region
        %s90 = ssub.s32 %s10, 1
      $region12: #{tpu_custom_call.1} parent=5 // pred_fallthru
        _
      %p91 = scmp.lt.s32.totalorder %s10, 2
      // Predicated region
      $region13: #{tpu_custom_call.1} parent=5 // pred_check
        %p92 = pneg %p91
      $region14: #{tpu_custom_call.1} parent=5 // pred_check_branch
        %94 = sbr.rel (%p92) target = $region16
      $region15: #{tpu_custom_call.1} parent=5 // pred_region
        // Predicated region
        $region17: #{tpu_custom_call.1} parent=15 // pred_check
          %p95 = pneg %p44
        $region18: #{tpu_custom_call.1} parent=15 // pred_check_branch
          %97 = sbr.rel (%p95) target = $region20
        $region19: #{tpu_custom_call.1} parent=15 // pred_region
          %s98 = smul.u32 16, %s18
          %p99 = scmp.lt.s32.totalorder %s17, 1
          %s100 = scalar_select %p99, %s17, 1
          %p101 = scmp.lt.s32.totalorder %s98, 15
          %s102 = scalar_select %p101, %s98, 15
          %s103 = smul.addr %s102, 2
          %s104 = smul.addr %s100, 32
          %s105 = sadd.s32 %s103, %s104
          %s106 = smul.addr %s105, 8
          %s107 = scalar_lea.vmem %s0, %s106
          %s108 = smul.u32 16, %s18
        $region20: #{tpu_custom_call.1} parent=15 // pred_fallthru
          _
      $region16: #{tpu_custom_call.1} parent=5 // pred_fallthru
        _
      %p109 = scmp.le.s32.totalorder 1, %s10
      %p110 = scmp.lt.s32.totalorder %s10, 3
      %p111 = pnand %p109, %p110
      %p112 = pneg %p111
      // Predicated region
      $region21: #{tpu_custom_call.1} parent=5 // pred_check
        _
      $region22: #{tpu_custom_call.1} parent=5 // pred_check_branch
        %114 = sbr.rel (%p111) target = $region24
      $region23: #{tpu_custom_call.1} parent=5 // pred_region
        %s115 = ssub.s32 %s10, 1
        %s116 = smul.u32 16, %s20
        %p117 = scmp.lt.s32.totalorder %s19, 1
        %s118 = scalar_select %p117, %s19, 1
        %p119 = scmp.lt.s32.totalorder %s116, 15
        %s120 = scalar_select %p119, %s116, 15
        %s121 = smul.addr %s120, 2
        %s122 = smul.addr %s118, 32
        %s123 = sadd.s32 %s121, %s122
        %s124 = smul.addr %s123, 8
        %s125 = scalar_lea.vmem %s0, %s124
        %p126 = pneg %p50
        %p127 = pneg %p47
        %p128 = pneg %p76
        %p129 = pneg %p73
        %s130 = sand.u32 %s63, 1
        %s131 = scalar_lea.sflag [#allocation3], %s130
        %s132 = sand.u32 %s63, 1
        %s133 = smul.addr %s132, 2
        %s134 = scalar_lea.vmem [#allocation2], %s133
        %s135 = smul.u32 16, %s20
        %p136 = scmp.lt.s32.totalorder %s19, 1
        %s137 = scalar_select %p136, %s19, 1
        %p138 = scmp.lt.s32.totalorder %s135, 15
        %s139 = scalar_select %p138, %s135, 15
        %s140 = smul.addr %s139, 2
        %s141 = smul.addr %s137, 32
        %s142 = sadd.s32 %s140, %s141
        %s143 = smul.addr %s142, 8
        %s144 = scalar_lea.vmem %s0, %s143
        %s145 = smul.u32 16, %s20
        %p146 = scmp.eq.s32.totalorder %s20, 0
        // Predicated region
        $region25: #{tpu_custom_call.1} parent=23 // pred_check
          %p147 = pneg %p146
        $region26: #{tpu_custom_call.1} parent=23 // pred_check_branch
          %149 = sbr.rel (%p147) target = $region28
        $region27: #{tpu_custom_call.1} parent=23 // pred_region
          %vm150 = vcmask 25600
          %151 = vst.msk [vmem:[%s134] sm:$0x3] %vm150, 0.0
        $region28: #{tpu_custom_call.1} parent=23 // pred_fallthru
          _
        %s152 = smul.u32 %s20, 16
        %v153 = vstv %s152
        %v154 = vadd.s32 %v153, 1
        %v155 = vadd.s32 %v153, 2
        %v156 = vadd.s32 %v153, 3
        %v157 = vadd.s32 %v153, 4
        %v158 = vadd.s32 %v153, 5
        %v159 = vadd.s32 %v153, 6
        %v160 = vadd.s32 %v153, 7
        %v161 = vadd.s32 %v153, 8
        %v162 = vadd.s32 %v153, 9
        %v163 = vadd.s32 %v153, 10
        %v164 = vadd.s32 %v153, 11
        %v165 = vadd.s32 %v153, 12
        %v166 = vadd.s32 %v153, 13
        %v167 = vadd.s32 %v153, 14
        %v168 = vadd.s32 %v153, 15
        %vm169 = vcmp.lt.s32.totalorder %v153, 16
        %vm170 = vcmp.lt.s32.totalorder %v154, 16
        %vm171 = vcmp.lt.s32.totalorder %v155, 16
        %vm172 = vcmp.lt.s32.totalorder %v156, 16
        %vm173 = vcmp.lt.s32.totalorder %v157, 16
        %vm174 = vcmp.lt.s32.totalorder %v158, 16
        %vm175 = vcmp.lt.s32.totalorder %v159, 16
        %vm176 = vcmp.lt.s32.totalorder %v160, 16
        %vm177 = vcmp.lt.s32.totalorder %v161, 16
        %vm178 = vcmp.lt.s32.totalorder %v162, 16
        %vm179 = vcmp.lt.s32.totalorder %v163, 16
        %vm180 = vcmp.lt.s32.totalorder %v164, 16
        %vm181 = vcmp.lt.s32.totalorder %v165, 16
        %vm182 = vcmp.lt.s32.totalorder %v166, 16
        %vm183 = vcmp.lt.s32.totalorder %v167, 16
        %vm184 = vcmp.lt.s32.totalorder %v168, 16
        %v185 = vld [vmem:[%s144] sm:$0xff]
        %v186 = vld [vmem:[%s144 + $0x8] sm:$0xff]
        %v187 = vld [vmem:[%s144 + $0x10] sm:$0xff]
        %v188 = vld [vmem:[%s144 + $0x18] sm:$0xff]
        %v189 = vld [vmem:[%s144 + $0x20] sm:$0xff]
        %v190 = vld [vmem:[%s144 + $0x28] sm:$0xff]
        %v191 = vld [vmem:[%s144 + $0x30] sm:$0xff]
        %v192 = vld [vmem:[%s144 + $0x38] sm:$0xff]
        %v193 = vld [vmem:[%s144 + $0x40] sm:$0xff]
        %v194 = vld [vmem:[%s144 + $0x48] sm:$0xff]
        %v195 = vld [vmem:[%s144 + $0x50] sm:$0xff]
        %v196 = vld [vmem:[%s144 + $0x58] sm:$0xff]
        %v197 = vld [vmem:[%s144 + $0x60] sm:$0xff]
        %v198 = vld [vmem:[%s144 + $0x68] sm:$0xff]
        %v199 = vld [vmem:[%s144 + $0x70] sm:$0xff]
        %v200 = vld [vmem:[%s144 + $0x78] sm:$0xff]
        %v201 = vld [vmem:[%s144 + $0x80] sm:$0xff]
        %v202 = vld [vmem:[%s144 + $0x88] sm:$0xff]
        %v203 = vld [vmem:[%s144 + $0x90] sm:$0xff]
        %v204 = vld [vmem:[%s144 + $0x98] sm:$0xff]
        %v205 = vld [vmem:[%s144 + $0xa0] sm:$0xff]
        %v206 = vld [vmem:[%s144 + $0xa8] sm:$0xff]
        %v207 = vld [vmem:[%s144 + $0xb0] sm:$0xff]
        %v208 = vld [vmem:[%s144 + $0xb8] sm:$0xff]
        %v209 = vld [vmem:[%s144 + $0xc0] sm:$0xff]
        %v210 = vld [vmem:[%s144 + $0xc8] sm:$0xff]
        %v211 = vld [vmem:[%s144 + $0xd0] sm:$0xff]
        %v212 = vld [vmem:[%s144 + $0xd8] sm:$0xff]
        %v213 = vld [vmem:[%s144 + $0xe0] sm:$0xff]
        %v214 = vld [vmem:[%s144 + $0xe8] sm:$0xff]
        %v215 = vld [vmem:[%s144 + $0xf0] sm:$0xff]
        %v216 = vld [vmem:[%s144 + $0xf8] sm:$0xff]
        %v217 = vsel %vm169, 1, 0
        %v218 = vsel %vm170, 1, 0
        %v219 = vsel %vm171, 1, 0
        %v220 = vsel %vm172, 1, 0
        %v221 = vsel %vm173, 1, 0
        %v222 = vsel %vm174, 1, 0
        %v223 = vsel %vm175, 1, 0
        %v224 = vsel %vm176, 1, 0
        %v225 = vsel %vm177, 1, 0
        %v226 = vsel %vm178, 1, 0
        %v227 = vsel %vm179, 1, 0
        %v228 = vsel %vm180, 1, 0
        %v229 = vsel %vm181, 1, 0
        %v230 = vsel %vm182, 1, 0
        %v231 = vsel %vm183, 1, 0
        %v232 = vsel %vm184, 1, 0
        %vm233 = vcmp.eq.s32.totalorder %v217, 1
        %vm234 = vcmp.eq.s32.totalorder %v218, 1
        %vm235 = vcmp.eq.s32.totalorder %v219, 1
        %vm236 = vcmp.eq.s32.totalorder %v220, 1
        %vm237 = vcmp.eq.s32.totalorder %v221, 1
        %vm238 = vcmp.eq.s32.totalorder %v222, 1
        %vm239 = vcmp.eq.s32.totalorder %v223, 1
        %vm240 = vcmp.eq.s32.totalorder %v224, 1
        %vm241 = vcmp.eq.s32.totalorder %v225, 1
        %vm242 = vcmp.eq.s32.totalorder %v226, 1
        %vm243 = vcmp.eq.s32.totalorder %v227, 1
        %vm244 = vcmp.eq.s32.totalorder %v228, 1
        %vm245 = vcmp.eq.s32.totalorder %v229, 1
        %vm246 = vcmp.eq.s32.totalorder %v230, 1
        %vm247 = vcmp.eq.s32.totalorder %v231, 1
        %vm248 = vcmp.eq.s32.totalorder %v232, 1
        %v249 = vsel %vm233, %v185, 0.0
        %v250 = vsel %vm233, %v186, 0.0
        %v251 = vsel %vm234, %v187, 0.0
        %v252 = vsel %vm234, %v188, 0.0
        %v253 = vsel %vm235, %v189, 0.0
        %v254 = vsel %vm235, %v190, 0.0
        %v255 = vsel %vm236, %v191, 0.0
        %v256 = vsel %vm236, %v192, 0.0
        %v257 = vsel %vm237, %v193, 0.0
        %v258 = vsel %vm237, %v194, 0.0
        %v259 = vsel %vm238, %v195, 0.0
        %v260 = vsel %vm238, %v196, 0.0
        %v261 = vsel %vm239, %v197, 0.0
        %v262 = vsel %vm239, %v198, 0.0
        %v263 = vsel %vm240, %v199, 0.0
        %v264 = vsel %vm240, %v200, 0.0
        %v265 = vsel %vm241, %v201, 0.0
        %v266 = vsel %vm241, %v202, 0.0
        %v267 = vsel %vm242, %v203, 0.0
        %v268 = vsel %vm242, %v204, 0.0
        %v269 = vsel %vm243, %v205, 0.0
        %v270 = vsel %vm243, %v206, 0.0
        %v271 = vsel %vm244, %v207, 0.0
        %v272 = vsel %vm244, %v208, 0.0
        %v273 = vsel %vm245, %v209, 0.0
        %v274 = vsel %vm245, %v210, 0.0
        %v275 = vsel %vm246, %v211, 0.0
        %v276 = vsel %vm246, %v212, 0.0
        %v277 = vsel %vm247, %v213, 0.0
        %v278 = vsel %vm247, %v214, 0.0
        %v279 = vsel %vm248, %v215, 0.0
        %v280 = vsel %vm248, %v216, 0.0
        %vm281 = vcmask 31744
        %v282 = vsel %vm281, %v249, 0.0
        %v283 = vsel %vm281, %v250, 0.0
        %v284 = vadd.f32 %v282, %v283
        %v285 = vsel %vm281, %v251, 0.0
        %v286 = vadd.f32 %v284, %v285
        %v287 = vsel %vm281, %v252, 0.0
        %v288 = vadd.f32 %v286, %v287
        %v289 = vsel %vm281, %v253, 0.0
        %v290 = vadd.f32 %v288, %v289
        %v291 = vsel %vm281, %v254, 0.0
        %v292 = vadd.f32 %v290, %v291
        %v293 = vsel %vm281, %v255, 0.0
        %v294 = vadd.f32 %v292, %v293
        %v295 = vsel %vm281, %v256, 0.0
        %v296 = vadd.f32 %v294, %v295
        %v297 = vsel %vm281, %v257, 0.0
        %v298 = vadd.f32 %v296, %v297
        %v299 = vsel %vm281, %v258, 0.0
        %v300 = vadd.f32 %v298, %v299
        %v301 = vsel %vm281, %v259, 0.0
        %v302 = vadd.f32 %v300, %v301
        %v303 = vsel %vm281, %v260, 0.0
        %v304 = vadd.f32 %v302, %v303
        %v305 = vsel %vm281, %v261, 0.0
        %v306 = vadd.f32 %v304, %v305
        %v307 = vsel %vm281, %v262, 0.0
        %v308 = vadd.f32 %v306, %v307
        %v309 = vsel %vm281, %v263, 0.0
        %v310 = vadd.f32 %v308, %v309
        %v311 = vsel %vm281, %v264, 0.0
        %v312 = vadd.f32 %v310, %v311
        %v313 = vsel %vm281, %v265, 0.0
        %v314 = vadd.f32 %v312, %v313
        %v315 = vsel %vm281, %v266, 0.0
        %v316 = vadd.f32 %v314, %v315
        %v317 = vsel %vm281, %v267, 0.0
        %v318 = vadd.f32 %v316, %v317
        %v319 = vsel %vm281, %v268, 0.0
        %v320 = vadd.f32 %v318, %v319
        %v321 = vsel %vm281, %v269, 0.0
        %v322 = vadd.f32 %v320, %v321
        %v323 = vsel %vm281, %v270, 0.0
        %v324 = vadd.f32 %v322, %v323
        %v325 = vsel %vm281, %v271, 0.0
        %v326 = vadd.f32 %v324, %v325
        %v327 = vsel %vm281, %v272, 0.0
        %v328 = vadd.f32 %v326, %v327
        %v329 = vsel %vm281, %v273, 0.0
        %v330 = vadd.f32 %v328, %v329
        %v331 = vsel %vm281, %v274, 0.0
        %v332 = vadd.f32 %v330, %v331
        %v333 = vsel %vm281, %v275, 0.0
        %v334 = vadd.f32 %v332, %v333
        %v335 = vsel %vm281, %v276, 0.0
        %v336 = vadd.f32 %v334, %v335
        %v337 = vsel %vm281, %v277, 0.0
        %v338 = vadd.f32 %v336, %v337
        %v339 = vsel %vm281, %v278, 0.0
        %v340 = vadd.f32 %v338, %v339
        %v341 = vsel %vm281, %v279, 0.0
        %v342 = vadd.f32 %v340, %v341
        %v343 = vsel %vm281, %v280, 0.0
        %v344 = vadd.f32 %v342, %v343
        %v345 = vrot.slane %v344, 4
        %v346 = vadd.f32 %v344, %v345
        %v347 = vrot.slane %v346, 2
        %v348 = vadd.f32 %v346, %v347
        %v349 = vrot.slane %v348, 1
        %v350 = vadd.f32 %v348, %v349
        %v351 = vmul.f32 %v249, %v249
        %v352 = vmul.f32 %v250, %v250
        %v353 = vmul.f32 %v251, %v251
        %v354 = vmul.f32 %v252, %v252
        %v355 = vmul.f32 %v253, %v253
        %v356 = vmul.f32 %v254, %v254
        %v357 = vmul.f32 %v255, %v255
        %v358 = vmul.f32 %v256, %v256
        %v359 = vmul.f32 %v257, %v257
        %v360 = vmul.f32 %v258, %v258
        %v361 = vmul.f32 %v259, %v259
        %v362 = vmul.f32 %v260, %v260
        %v363 = vmul.f32 %v261, %v261
        %v364 = vmul.f32 %v262, %v262
        %v365 = vmul.f32 %v263, %v263
        %v366 = vmul.f32 %v264, %v264
        %v367 = vmul.f32 %v265, %v265
        %v368 = vmul.f32 %v266, %v266
        %v369 = vmul.f32 %v267, %v267
        %v370 = vmul.f32 %v268, %v268
        %v371 = vmul.f32 %v269, %v269
        %v372 = vmul.f32 %v270, %v270
        %v373 = vmul.f32 %v271, %v271
        %v374 = vmul.f32 %v272, %v272
        %v375 = vmul.f32 %v273, %v273
        %v376 = vmul.f32 %v274, %v274
        %v377 = vmul.f32 %v275, %v275
        %v378 = vmul.f32 %v276, %v276
        %v379 = vmul.f32 %v277, %v277
        %v380 = vmul.f32 %v278, %v278
        %v381 = vmul.f32 %v279, %v279
        %v382 = vmul.f32 %v280, %v280
        %v383 = vsel %vm281, %v351, 0.0
        %v384 = vsel %vm281, %v352, 0.0
        %v385 = vadd.f32 %v383, %v384
        %v386 = vsel %vm281, %v353, 0.0
        %v387 = vadd.f32 %v385, %v386
        %v388 = vsel %vm281, %v354, 0.0
        %v389 = vadd.f32 %v387, %v388
        %v390 = vsel %vm281, %v355, 0.0
        %v391 = vadd.f32 %v389, %v390
        %v392 = vsel %vm281, %v356, 0.0
        %v393 = vadd.f32 %v391, %v392
        %v394 = vsel %vm281, %v357, 0.0
        %v395 = vadd.f32 %v393, %v394
        %v396 = vsel %vm281, %v358, 0.0
        %v397 = vadd.f32 %v395, %v396
        %v398 = vsel %vm281, %v359, 0.0
        %v399 = vadd.f32 %v397, %v398
        %v400 = vsel %vm281, %v360, 0.0
        %v401 = vadd.f32 %v399, %v400
        %v402 = vsel %vm281, %v361, 0.0
        %v403 = vadd.f32 %v401, %v402
        %v404 = vsel %vm281, %v362, 0.0
        %v405 = vadd.f32 %v403, %v404
        %v406 = vsel %vm281, %v363, 0.0
        %v407 = vadd.f32 %v405, %v406
        %v408 = vsel %vm281, %v364, 0.0
        %v409 = vadd.f32 %v407, %v408
        %v410 = vsel %vm281, %v365, 0.0
        %v411 = vadd.f32 %v409, %v410
        %v412 = vsel %vm281, %v366, 0.0
        %v413 = vadd.f32 %v411, %v412
        %v414 = vsel %vm281, %v367, 0.0
        %v415 = vadd.f32 %v413, %v414
        %v416 = vsel %vm281, %v368, 0.0
        %v417 = vadd.f32 %v415, %v416
        %v418 = vsel %vm281, %v369, 0.0
        %v419 = vadd.f32 %v417, %v418
        %v420 = vsel %vm281, %v370, 0.0
        %v421 = vadd.f32 %v419, %v420
        %v422 = vsel %vm281, %v371, 0.0
        %v423 = vadd.f32 %v421, %v422
        %v424 = vsel %vm281, %v372, 0.0
        %v425 = vadd.f32 %v423, %v424
        %v426 = vsel %vm281, %v373, 0.0
        %v427 = vadd.f32 %v425, %v426
        %v428 = vsel %vm281, %v374, 0.0
        %v429 = vadd.f32 %v427, %v428
        %v430 = vsel %vm281, %v375, 0.0
        %v431 = vadd.f32 %v429, %v430
        %v432 = vsel %vm281, %v376, 0.0
        %v433 = vadd.f32 %v431, %v432
        %v434 = vsel %vm281, %v377, 0.0
        %v435 = vadd.f32 %v433, %v434
        %v436 = vsel %vm281, %v378, 0.0
        %v437 = vadd.f32 %v435, %v436
        %v438 = vsel %vm281, %v379, 0.0
        %v439 = vadd.f32 %v437, %v438
        %v440 = vsel %vm281, %v380, 0.0
        %v441 = vadd.f32 %v439, %v440
        %v442 = vsel %vm281, %v381, 0.0
        %v443 = vadd.f32 %v441, %v442
        %v444 = vsel %vm281, %v382, 0.0
        %v445 = vadd.f32 %v443, %v444
        %v446 = vrot.slane %v445, 4
        %v447 = vadd.f32 %v445, %v446
        %v448 = vrot.slane %v447, 2
        %v449 = vadd.f32 %v447, %v448
        %v450 = vrot.slane %v449, 1
        %v451 = vadd.f32 %v449, %v450
        %v452 = vld [vmem:[%s134] sm:$0x3]
        %vm453 = vcmask 1040384
        %v454 = vsel %vm453, %v350, %v451
        %v455 = vadd.f32 %v452, %v454
        %vm456 = vcmask 25600
        %457 = vst.msk [vmem:[%s134] sm:$0x3] %vm456, %v455
        %s458 = sand.u32 %s63, 1
        %s459 = scalar_lea.sflag [#allocation3], %s458
        %s460 = sand.u32 %s63, 1
        %s461 = smul.addr %s460, 2
        %s462 = scalar_lea.vmem [#allocation2], %s461
        // Predicated region
        $region29: #{tpu_custom_call.1} parent=23 // pred_check
          %p463 = pneg %p73
        $region30: #{tpu_custom_call.1} parent=23 // pred_check_branch
          %465 = sbr.rel (%p463) target = $region32
        $region31: #{tpu_custom_call.1} parent=23 // pred_region
          %467 = vsyncadd %s459, 0
          %s468 = smul.addr %s19, 2
          %s469 = scalar_lea.hbm %s1, %s468
          %s471 = sshll.u32 %s462, 4
          %s472 = int_to_ptr.vmem [resolvable:$true] %s471
          %s473 = sshll.u32 %s469, 4
          %s474 = int_to_ptr.hbm [resolvable:$true] %s473
          %476 = dma.vmem_to_hbm [thread:$0]  %s472, 32, %s474, %s459
        $region32: #{tpu_custom_call.1} parent=23 // pred_fallthru
          _
      $region24: #{tpu_custom_call.1} parent=5 // pred_fallthru
        _
      %p477 = scmp.le.s32.totalorder 2, %s10
      // Predicated region
      $region33: #{tpu_custom_call.1} parent=5 // pred_check
        %p478 = pneg %p477
      $region34: #{tpu_custom_call.1} parent=5 // pred_check_branch
        %480 = sbr.rel (%p478) target = $region36
      $region35: #{tpu_custom_call.1} parent=5 // pred_region
        %s481 = ssub.s32 %s10, 2
        // Predicated region
        $region37: #{tpu_custom_call.1} parent=35 // pred_check
          %p482 = pneg %p79
        $region38: #{tpu_custom_call.1} parent=35 // pred_check_branch
          %484 = sbr.rel (%p482) target = $region40
        $region39: #{tpu_custom_call.1} parent=35 // pred_region
          %s485 = sand.u32 %s64, 1
          %s486 = scalar_lea.sflag [#allocation3], %s485
          %s487 = sand.u32 %s64, 1
          %s488 = smul.addr %s487, 2
          %s489 = scalar_lea.vmem [#allocation2], %s488
          %491 = dma.done %s486, 32
        $region40: #{tpu_custom_call.1} parent=35 // pred_fallthru
          _
      $region36: #{tpu_custom_call.1} parent=5 // pred_fallthru
        _
    $region6: #{tpu_custom_call.1} parent=1 // loop_footer
      %s14 = sadd.s32 1, %s10
    $region7: #{tpu_custom_call.1} parent=1 // loop_footer_branch
      %9 = sbr.rel target = $region3
    $region8: #{tpu_custom_call.1} parent=1 // loop_exit
      _
    %492 = vsyncpa [#allocation3], 1
    %s493 = scalar_lea.sflag [#allocation3], 1
    %494 = vsyncpa %s493, 1

</llo_original>
